<compile_context>
chip_gen: v7x
topology: tpu7x:2x2x1
jax: 0.10.0
libtpu: 0.0.40
codegen_flags: <defaults>
</compile_context>

<pallas_src>
import functools
import math

import jax
import jax.numpy as jnp
from jax.experimental import pallas as pl
from jax.experimental.pallas import tpu as pltpu

_LANE = 128           # lane (last-dim) granularity


def _round_up(x: int, m: int) -> int:
    return ((x + m - 1) // m) * m


def _vmem_budget_bytes() -> int:
    """Usable VMEM: physical capacity derated ~20% for compiler scratch/pipeline."""
    try:
        cap = int(pltpu.get_tpu_info().vmem_capacity_bytes)
    except Exception:
        cap = 64 << 20        # conservative fallback: assume v7x-sized VMEM
    return max(16 << 20, int(cap * 0.8))


def _pick_batch_tile(B: int, cap: int, align: int) -> int:
    """Batch tile: >=2 grid steps when possible (v7x megacore), 256-aligned when big."""
    cap = max(align, (cap // align) * align)
    if B <= align:
        return align
    half = (B + 1) // 2
    a = 256 if (half >= 256 and cap >= 256) else align
    return min(_round_up(half, a), cap)


def _largest_tile(d: int) -> int:
    """Largest of 512/256/128 dividing d, else the full dim (legal as a block dim)."""
    for t in (512, 256, 128):
        if d % t == 0:
            return t
    return d


# ----------------------------------------------------------------------------
# Kernel 1: whole MLP fused, weights VMEM-resident, batch-only grid.
# ----------------------------------------------------------------------------
def _fused_mlp_kernel(x_ref, *refs, relu_flags, compute_dtype):
    """All Linear[+ReLU] layers for one batch tile; activations never leave VMEM."""
    o_ref = refs[-1]
    n_layers = len(relu_flags)
    h = x_ref[...].astype(compute_dtype)
    for i, relu in enumerate(relu_flags):
        w_ref = refs[2 * i]
        b_ref = refs[2 * i + 1]
        y = jnp.dot(h, w_ref[...], preferred_element_type=jnp.float32)
        y = y + b_ref[...]                     # f32 epilogue (no bf16 VPU on v5e)
        if relu:
            y = jnp.maximum(y, 0.0)
        if i + 1 < n_layers:
            h = y.astype(compute_dtype)        # inter-layer activation in compute dtype
        else:
            o_ref[...] = y.astype(o_ref.dtype)


# ----------------------------------------------------------------------------
# Kernel 2: streamed fallback — one layer, batch/N/K-tiled with f32 accumulator.
# ----------------------------------------------------------------------------
def _tiled_linear_kernel(x_ref, w_ref, b_ref, o_ref, acc_ref, *, relu, compute_dtype):
    @pl.when(pl.program_id(2) == 0)
    def _init():
        acc_ref[...] = jnp.zeros_like(acc_ref)

    acc_ref[...] += jnp.dot(x_ref[...].astype(compute_dtype), w_ref[...],
                            preferred_element_type=jnp.float32)

    @pl.when(pl.program_id(2) == pl.num_programs(2) - 1)
    def _finish():
        y = acc_ref[...] + b_ref[...]
        if relu:
            y = jnp.maximum(y, 0.0)
        o_ref[...] = y.astype(o_ref.dtype)


def _tiled_linear(x, w, b, *, relu, out_dtype, compute_dtype, tb, vmem_limit):
    B, K = x.shape
    Kw, N = w.shape
    assert K == Kw, (K, Kw)
    tk = _largest_tile(K)
    tn = _largest_tile(N)   # TODO(synk): cap tn and pad N if a huge unpadded last layer ever appears
    grid = (pl.cdiv(B, tb), N // tn, K // tk)
    flops = 2 * B * K * N
    bytes_accessed = (B * K * x.dtype.itemsize + K * N * w.dtype.itemsize
                      + N * 4 + B * N * jnp.dtype(out_dtype).itemsize)
    return pl.pallas_call(
        functools.partial(_tiled_linear_kernel, relu=relu, compute_dtype=compute_dtype),
        out_shape=jax.ShapeDtypeStruct((B, N), out_dtype),
        grid=grid,
        in_specs=[
            pl.BlockSpec((tb, tk), lambda i, j, k: (i, k)),
            pl.BlockSpec((tk, tn), lambda i, j, k: (k, j)),
            pl.BlockSpec((1, tn), lambda i, j, k: (0, j)),
        ],
        out_specs=pl.BlockSpec((tb, tn), lambda i, j, k: (i, j)),
        scratch_shapes=[pltpu.VMEM((tb, tn), jnp.float32)],
        compiler_params=pltpu.CompilerParams(
            dimension_semantics=("parallel", "parallel", "arbitrary"),
            vmem_limit_bytes=int(vmem_limit)),
        cost_estimate=pl.CostEstimate(flops=int(flops), transcendentals=0,
                                      bytes_accessed=int(bytes_accessed)),
    )(x, w, b)


# ----------------------------------------------------------------------------
# Module wrapper
# ----------------------------------------------------------------------------
class MlpModelPallas:
    """JAX/Pallas equivalent of rsl_rl MlpModel.

    Hidden layers: Linear -> ReLU (repeated); optional final Linear with no
    nonlinearity (exactly the torch.nn.Sequential built in the reference).
    """

    def __init__(self, input_size, hidden_sizes, output_size=None, key=None,
                 compute_dtype=jnp.bfloat16, batch_tile=512, force_streaming=False):
        if isinstance(hidden_sizes, int):
            hidden_sizes = [hidden_sizes]
        elif hidden_sizes is None:
            hidden_sizes = []
        if key is None:
            key = jax.random.PRNGKey(0)

        self.input_size = int(input_size)
        self.compute_dtype = jnp.dtype(compute_dtype)
        self.batch_tile = max(8, int(batch_tile))

        # ----- raw (unpadded, f32) params, torch.nn.Linear-style init -----
        self.params = []   # (W [Din, Dout], b [Dout], apply_relu)
        in_sizes = [input_size] + hidden_sizes[:-1]
        for n_in, n_out in zip(in_sizes, hidden_sizes):
            key, kw, kb = jax.random.split(key, 3)
            bound = 1.0 / math.sqrt(n_in)
            w = jax.random.uniform(kw, (n_in, n_out), jnp.float32, -bound, bound)
            b = jax.random.uniform(kb, (n_out,), jnp.float32, -bound, bound)
            self.params.append((w, b, True))
        if output_size is not None:
            last_size = hidden_sizes[-1] if hidden_sizes else input_size
            key, kw, kb = jax.random.split(key, 3)
            bound = 1.0 / math.sqrt(last_size)
            w = jax.random.uniform(kw, (last_size, output_size), jnp.float32, -bound, bound)
            b = jax.random.uniform(kb, (output_size,), jnp.float32, -bound, bound)
            self.params.append((w, b, False))

        self._output_size = hidden_sizes[-1] if output_size is None else output_size
        self._relu_flags = tuple(r for _, _, r in self.params)

        # ----- kernel-ready params (zero padding is mathematically inert) -----
        # layer-0 contraction dim stays the raw input_size; hidden output dims
        # are padded to 128 lanes; the final output dim stays unpadded so the
        # wrapper needs no output slice.
        flat, k_dims, n_dims = [], [], []
        k_prev = self.input_size
        n_layers = len(self.params)
        for li, (w, b, _) in enumerate(self.params):
            din, dout = w.shape
            n_dim = dout if li == n_layers - 1 else _round_up(dout, _LANE)
            wp = jnp.zeros((k_prev, n_dim), jnp.float32).at[:din, :dout].set(w)
            bp = jnp.zeros((1, n_dim), jnp.float32).at[0, :dout].set(b)
            flat.append(wp.astype(self.compute_dtype))   # weights in compute dtype
            flat.append(bp)                              # biases stay f32 (f32 epilogue)
            k_dims.append(k_prev)
            n_dims.append(n_dim)
            k_prev = n_dim
        self._flat_params = tuple(flat)
        self._k_dims = tuple(k_dims)
        self._n_dims = tuple(n_dims)

        # ----- generation-aware VMEM budget & path selection -----
        self._vmem_budget = _vmem_budget_bytes()
        self._param_bytes = sum(int(p.size) * p.dtype.itemsize for p in flat)
        if self.params:
            dL, max_n, tb_max = n_dims[-1], max(n_dims), self.batch_tile
            self._resident_est = (self._param_bytes             # Buffered(1): one copy
                                  + 2 * tb_max * self.input_size * 4   # x tiles (dbl buf)
                                  + 2 * tb_max * dL * 4                # out tiles (dbl buf)
                                  + 3 * tb_max * max_n * 4             # live f32 intermediates
                                  + (2 << 20))                         # headroom
            self._use_resident = (not force_streaming) and (
                self._resident_est <= self._vmem_budget)
        else:
            self._resident_est = 0
            self._use_resident = True

        self._forward = jax.jit(self._build_resident_forward() if self._use_resident
                                else self._build_streaming_forward())

    @property
    def output_size(self):
        return self._output_size

    # ---------------- resident (fused, weight-in-VMEM) path ----------------
    def _build_resident_forward(self):
        relu_flags = self._relu_flags
        compute_dtype = self.compute_dtype
        in_size = self.input_size
        k_dims, n_dims = self._k_dims, self._n_dims
        batch_tile = self.batch_tile
        vmem_budget = self._vmem_budget
        param_bytes = self._param_bytes

        def forward(x, flat_params):
            if not relu_flags:
                return x
            B, Din = x.shape
            assert Din == in_size, (Din, in_size)
            dL = n_dims[-1]

            tb = _pick_batch_tile(B, batch_tile, 8)
            # Pad only when the whole batch is smaller than a single tile (cheap);
            # otherwise the ragged last batch tile is masked by Pallas — no extra
            # HBM round trip for real batches.
            if B < tb:
                x_in, Bp = jnp.pad(x, ((0, tb - B), (0, 0))), tb
            else:
                x_in, Bp = x, B
            grid = (pl.cdiv(Bp, tb),)

            in_specs = [pl.BlockSpec((tb, Din), lambda i: (i, 0))]
            for li in range(len(relu_flags)):
                # Constant block index + single buffering: fetched once, VMEM-resident.
                in_specs.append(pl.BlockSpec((k_dims[li], n_dims[li]), lambda i: (0, 0),
                                             pipeline_mode=pl.Buffered(buffer_count=1)))
                in_specs.append(pl.BlockSpec((1, n_dims[li]), lambda i: (0, 0),
                                             pipeline_mode=pl.Buffered(buffer_count=1)))
            out_specs = pl.BlockSpec((tb, dL), lambda i: (i, 0))

            flops = sum(2 * Bp * k_dims[i] * n_dims[i] for i in range(len(relu_flags)))
            bytes_accessed = (Bp * Din * x.dtype.itemsize
                              + Bp * dL * x.dtype.itemsize + param_bytes)
            vmem_est = (param_bytes + 2 * tb * Din * 4 + 2 * tb * dL * 4
                        + 3 * tb * max(n_dims) * 4 + (2 << 20))
            vmem_limit = int(min(vmem_budget, max(vmem_est, 16 << 20)))

            kernel = functools.partial(_fused_mlp_kernel, relu_flags=relu_flags,
                                       compute_dtype=compute_dtype)
            out = pl.pallas_call(
                kernel,
                out_shape=jax.ShapeDtypeStruct((Bp, dL), x.dtype),
                grid=grid,
                in_specs=in_specs,
                out_specs=out_specs,
                compiler_params=pltpu.CompilerParams(
                    dimension_semantics=("parallel",),
                    vmem_limit_bytes=vmem_limit),
                cost_estimate=pl.CostEstimate(flops=int(flops), transcendentals=0,
                                              bytes_accessed=int(bytes_accessed)),
            )(x_in, *flat_params)
            return out if Bp == B else out[:B]

        return forward

    # ---------------- streamed (per-layer tiled) fallback path ----------------
    def _build_streaming_forward(self):
        relu_flags = self._relu_flags
        compute_dtype = self.compute_dtype
        in_size = self.input_size
        vmem_budget = self._vmem_budget

        def forward(x, flat_params):
            if not relu_flags:
                return x
            B, Din = x.shape
            assert Din == in_size, (Din, in_size)
            # bf16 intermediate activations are blocked here -> 16-row alignment.
            tb = _pick_batch_tile(B, 256, 16)
            if B < tb:
                h, Bp = jnp.pad(x, ((0, tb - B), (0, 0))), tb
            else:
                h, Bp = x, B
            n_layers = len(relu_flags)
            for li in range(n_layers):
                w = flat_params[2 * li]
                b = flat_params[2 * li + 1]
                out_dtype = x.dtype if li == n_layers - 1 else compute_dtype
                h = _tiled_linear(h, w, b, relu=relu_flags[li], out_dtype=out_dtype,
                                  compute_dtype=compute_dtype, tb=tb,
                                  vmem_limit=vmem_budget)
            return h if Bp == B else h[:B]

        return forward

    def __call__(self, x):
        if not self.params:
            return x
        return self._forward(x, self._flat_params)


def _reference_forward(model, x):
    """Pure-JAX f32 reference of the same forward pass (unpadded params)."""
    for w, b, apply_relu in model.params:
        x = x @ w + b
        if apply_relu:
            x = jnp.maximum(x, 0.0)
    return x


if __name__ == "__main__":
    key = jax.random.PRNGKey(0)
    k_in, k_model = jax.random.split(key)

    batch, input_size, hidden_sizes, output_size = 2, 16, [32, 32], 8
    x = jax.random.normal(k_in, (batch, input_size), jnp.float32)

    # 1) Default bf16 MXU path (fused, weight-resident kernel). bf16 matmul inputs
    #    with f32 accumulation -> compare against f32 reference with a bf16 bound.
    model = MlpModelPallas(input_size, hidden_sizes, output_size, key=k_model)
    out = jax.block_until_ready(model(x))
    ref = _reference_forward(model, x)
    assert out.shape == (batch, output_size), out.shape
    assert model._use_resident
    assert jnp.allclose(out, ref, atol=3e-2, rtol=3e-2), float(jnp.max(jnp.abs(out - ref)))

    # 2) f32 compute path: tight numeric check.
    model_f32 = MlpModelPallas(input_size, hidden_sizes, output_size, key=k_model,
                               compute_dtype=jnp.float32)
    out_f32 = jax.block_until_ready(model_f32(x))
    ref_f32 = _reference_forward(model_f32, x)
    assert jnp.allclose(out_f32, ref_f32, atol=1e-4, rtol=1e-4), float(
        jnp.max(jnp.abs(out_f32 - ref_f32)))

    # 3) Streamed / tiled fallback (what models exceeding the VMEM residency
    #    budget use), forced here so the path is compiled and checked too.
    model_stream = MlpModelPallas(input_size, hidden_sizes, output_size, key=k_model,
                                  force_streaming=True)
    out_s = jax.block_until_ready(model_stream(x))
    assert not model_stream._use_resident
    assert jnp.allclose(out_s, _reference_forward(model_stream, x), atol=3e-2, rtol=3e-2)

    print("KERNEL_OK")
</pallas_src>

<mosaic_0001>
module attributes {stable_mosaic.version = 11 : i64} {
  func.func @_fused_mlp_kernel(%arg0: i32, %arg1: memref<8x16xf32, #tpu.memory_space<vmem>>, %arg2: memref<16x128xbf16, #tpu.memory_space<vmem>>, %arg3: memref<1x128xf32, #tpu.memory_space<vmem>>, %arg4: memref<128x128xbf16, #tpu.memory_space<vmem>>, %arg5: memref<1x128xf32, #tpu.memory_space<vmem>>, %arg6: memref<128x8xbf16, #tpu.memory_space<vmem>>, %arg7: memref<1x8xf32, #tpu.memory_space<vmem>>, %arg8: memref<8x8xf32, #tpu.memory_space<vmem>>) attributes {dimension_semantics = [#tpu.dimension_semantics<parallel>], iteration_bounds = array<i64: 1>, scalar_prefetch = 0 : i64, scratch_operands = 0 : i64, tpu.core_type = #tpu.core_type<tc>, window_params = [{transform_indices = @transform_0, window_bounds = array<i64: 8, 16>}, {pipeline_mode = #tpu.pipeline_mode<synchronous>, transform_indices = @transform_1, window_bounds = array<i64: 16, 128>}, {pipeline_mode = #tpu.pipeline_mode<synchronous>, transform_indices = @transform_2, window_bounds = array<i64: 1, 128>}, {pipeline_mode = #tpu.pipeline_mode<synchronous>, transform_indices = @transform_3, window_bounds = array<i64: 128, 128>}, {pipeline_mode = #tpu.pipeline_mode<synchronous>, transform_indices = @transform_4, window_bounds = array<i64: 1, 128>}, {pipeline_mode = #tpu.pipeline_mode<synchronous>, transform_indices = @transform_5, window_bounds = array<i64: 128, 8>}, {pipeline_mode = #tpu.pipeline_mode<synchronous>, transform_indices = @transform_6, window_bounds = array<i64: 1, 8>}, {transform_indices = @transform_7, window_bounds = array<i64: 8, 8>}]} {
    %c0 = arith.constant 0 : index
    %c0_0 = arith.constant 0 : index
    %0 = vector.load %arg1[%c0, %c0_0] : memref<8x16xf32, #tpu.memory_space<vmem>>, vector<8x16xf32>
    %1 = arith.truncf %0 : vector<8x16xf32> to vector<8x16xbf16>
    %c0_1 = arith.constant 0 : index
    %c0_2 = arith.constant 0 : index
    %2 = vector.load %arg2[%c0_1, %c0_2] : memref<16x128xbf16, #tpu.memory_space<vmem>>, vector<16x128xbf16>
    %cst = arith.constant dense<0.000000e+00> : vector<8x128xf32>
    %3 = tpu.matmul %1, %2, %cst {dimension_numbers = #tpu.dot_dimension_numbers<[1], [0], [0], [1], [0, 0, 1, 1], [], []>} : vector<8x16xbf16>, vector<16x128xbf16>, vector<8x128xf32> -> vector<8x128xf32>
    %c0_3 = arith.constant 0 : index
    %c0_4 = arith.constant 0 : index
    %4 = vector.load %arg3[%c0_3, %c0_4] : memref<1x128xf32, #tpu.memory_space<vmem>>, vector<1x128xf32>
    %5 = vector.broadcast %4 : vector<1x128xf32> to vector<8x128xf32>
    %6 = arith.addf %3, %5 : vector<8x128xf32>
    %cst_5 = arith.constant 0.000000e+00 : f32
    %7 = vector.broadcast %cst_5 : f32 to vector<8x128xf32>
    %8 = arith.maximumf %6, %7 : vector<8x128xf32>
    %9 = arith.truncf %8 : vector<8x128xf32> to vector<8x128xbf16>
    %c0_6 = arith.constant 0 : index
    %c0_7 = arith.constant 0 : index
    %10 = vector.load %arg4[%c0_6, %c0_7] : memref<128x128xbf16, #tpu.memory_space<vmem>>, vector<128x128xbf16>
    %cst_8 = arith.constant dense<0.000000e+00> : vector<8x128xf32>
    %11 = tpu.matmul %9, %10, %cst_8 {dimension_numbers = #tpu.dot_dimension_numbers<[1], [0], [0], [1], [0, 0, 1, 1], [], []>} : vector<8x128xbf16>, vector<128x128xbf16>, vector<8x128xf32> -> vector<8x128xf32>
    %c0_9 = arith.constant 0 : index
    %c0_10 = arith.constant 0 : index
    %12 = vector.load %arg5[%c0_9, %c0_10] : memref<1x128xf32, #tpu.memory_space<vmem>>, vector<1x128xf32>
    %13 = vector.broadcast %12 : vector<1x128xf32> to vector<8x128xf32>
    %14 = arith.addf %11, %13 : vector<8x128xf32>
    %cst_11 = arith.constant 0.000000e+00 : f32
    %15 = vector.broadcast %cst_11 : f32 to vector<8x128xf32>
    %16 = arith.maximumf %14, %15 : vector<8x128xf32>
    %17 = arith.truncf %16 : vector<8x128xf32> to vector<8x128xbf16>
    %c0_12 = arith.constant 0 : index
    %c0_13 = arith.constant 0 : index
    %18 = vector.load %arg6[%c0_12, %c0_13] : memref<128x8xbf16, #tpu.memory_space<vmem>>, vector<128x8xbf16>
    %cst_14 = arith.constant dense<0.000000e+00> : vector<8x8xf32>
    %19 = tpu.matmul %17, %18, %cst_14 {dimension_numbers = #tpu.dot_dimension_numbers<[1], [0], [0], [1], [0, 0, 1, 1], [], []>} : vector<8x128xbf16>, vector<128x8xbf16>, vector<8x8xf32> -> vector<8x8xf32>
    %c0_15 = arith.constant 0 : index
    %c0_16 = arith.constant 0 : index
    %20 = vector.load %arg7[%c0_15, %c0_16] : memref<1x8xf32, #tpu.memory_space<vmem>>, vector<1x8xf32>
    %21 = vector.broadcast %20 : vector<1x8xf32> to vector<8x8xf32>
    %22 = arith.addf %19, %21 : vector<8x8xf32>
    %c0_17 = arith.constant 0 : index
    %c0_18 = arith.constant 0 : index
    %23 = vector.load %arg8[%c0_17, %c0_18] : memref<8x8xf32, #tpu.memory_space<vmem>>, vector<8x8xf32>
    tpu.vector_store %arg8[%c0_17, %c0_18], %22 {strides = array<i32>} : memref<8x8xf32, #tpu.memory_space<vmem>>, vector<8x8xf32>,
    return
  }
  func.func @transform_0(%arg0: i32) -> (i32, i32) {
    %c0_i32 = arith.constant 0 : i32
    %c0_i32_0 = arith.constant 0 : i32
    return %arg0, %c0_i32 : i32, i32
  }
  func.func @transform_1(%arg0: i32) -> (i32, i32) {
    %c0_i32 = arith.constant 0 : i32
    %c0_i32_0 = arith.constant 0 : i32
    %c0_i32_1 = arith.constant 0 : i32
    return %c0_i32, %c0_i32_0 : i32, i32
  }
  func.func @transform_2(%arg0: i32) -> (i32, i32) {
    %c0_i32 = arith.constant 0 : i32
    %c0_i32_0 = arith.constant 0 : i32
    %c0_i32_1 = arith.constant 0 : i32
    return %c0_i32, %c0_i32_0 : i32, i32
  }
  func.func @transform_3(%arg0: i32) -> (i32, i32) {
    %c0_i32 = arith.constant 0 : i32
    %c0_i32_0 = arith.constant 0 : i32
    %c0_i32_1 = arith.constant 0 : i32
    return %c0_i32, %c0_i32_0 : i32, i32
  }
  func.func @transform_4(%arg0: i32) -> (i32, i32) {
    %c0_i32 = arith.constant 0 : i32
    %c0_i32_0 = arith.constant 0 : i32
    %c0_i32_1 = arith.constant 0 : i32
    return %c0_i32, %c0_i32_0 : i32, i32
  }
  func.func @transform_5(%arg0: i32) -> (i32, i32) {
    %c0_i32 = arith.constant 0 : i32
    %c0_i32_0 = arith.constant 0 : i32
    %c0_i32_1 = arith.constant 0 : i32
    return %c0_i32, %c0_i32_0 : i32, i32
  }
  func.func @transform_6(%arg0: i32) -> (i32, i32) {
    %c0_i32 = arith.constant 0 : i32
    %c0_i32_0 = arith.constant 0 : i32
    %c0_i32_1 = arith.constant 0 : i32
    return %c0_i32, %c0_i32_0 : i32, i32
  }
  func.func @transform_7(%arg0: i32) -> (i32, i32) {
    %c0_i32 = arith.constant 0 : i32
    %c0_i32_0 = arith.constant 0 : i32
    return %arg0, %c0_i32 : i32, i32
  }
}

</mosaic_0001>

<llo_original>
// kernel: forward.1
$region0: #{forward.1}
  #allocation0 [shape = 'u32[]', space=smem, size = 0x4, offset = 0x4, fixed_abs, tag = 'smem constant byte address 0x4 - core index']
  #allocation1 [shape = 'u32[144,128]{1,0:T(1,128)}', space=vmem, size = 0x12000, scoped, tag = 'internal scratch']
  %s0 = inlined_call_operand.vmem [shape: f32[8,16], index: 0, kind: input, shape index: {}]
  %s1 = inlined_call_operand.vmem [shape: bf16[16,128], index: 1, kind: input, shape index: {}]
  %s2 = inlined_call_operand.vmem [shape: f32[1,128], index: 2, kind: input, shape index: {}]
  %s3 = inlined_call_operand.vmem [shape: bf16[128,128], index: 3, kind: input, shape index: {}]
  %s4 = inlined_call_operand.vmem [shape: f32[1,128], index: 4, kind: input, shape index: {}]
  %s5 = inlined_call_operand.vmem [shape: bf16[128,8], index: 5, kind: input, shape index: {}]
  %s6 = inlined_call_operand.vmem [shape: f32[1,8], index: 6, kind: input, shape index: {}]
  %s7 = inlined_call_operand.vmem [shape: f32[8,8], index: 7, kind: output, shape index: {}]
  %s8 = sld [smem:[#allocation0]]
  $region38: #{forward.1} parent=0
    _
  %s10 = ssub.s32 1, %s8
  %s11 = scalar_select 0, %s10, %s8
  // Predicated region
  $region2: #{forward.1} parent=0 // pred_check
    _
  $region3: #{forward.1} parent=0 // pred_check_branch
    %13 = sbr.rel (0) target = $region5
  $region4: #{forward.1} parent=0 // pred_region
    _
  $region5: #{forward.1} parent=0 // pred_fallthru
    _
  // Predicated region
  $region6: #{forward.1} parent=0 // pred_check
    _
  $region7: #{forward.1} parent=0 // pred_check_branch
    %15 = sbr.rel (0) target = $region9
  $region8: #{forward.1} parent=0 // pred_region
    _
  $region9: #{forward.1} parent=0 // pred_fallthru
    _
  // Predicated region
  $region10: #{forward.1} parent=0 // pred_check
    _
  $region11: #{forward.1} parent=0 // pred_check_branch
    %17 = sbr.rel (0) target = $region13
  $region12: #{forward.1} parent=0 // pred_region
    _
  $region13: #{forward.1} parent=0 // pred_fallthru
    _
  // Predicated region
  $region14: #{forward.1} parent=0 // pred_check
    _
  $region15: #{forward.1} parent=0 // pred_check_branch
    %19 = sbr.rel (0) target = $region17
  $region16: #{forward.1} parent=0 // pred_region
    _
  $region17: #{forward.1} parent=0 // pred_fallthru
    _
  // Predicated region
  $region18: #{forward.1} parent=0 // pred_check
    _
  $region19: #{forward.1} parent=0 // pred_check_branch
    %21 = sbr.rel (0) target = $region21
  $region20: #{forward.1} parent=0 // pred_region
    _
  $region21: #{forward.1} parent=0 // pred_fallthru
    _
  // Predicated region
  $region22: #{forward.1} parent=0 // pred_check
    _
  $region23: #{forward.1} parent=0 // pred_check_branch
    %23 = sbr.rel (0) target = $region25
  $region24: #{forward.1} parent=0 // pred_region
    _
  $region25: #{forward.1} parent=0 // pred_fallthru
    _
  // Predicated region
  $region26: #{forward.1} parent=0 // pred_check
    _
  $region27: #{forward.1} parent=0 // pred_check_branch
    %25 = sbr.rel (0) target = $region29
  $region28: #{forward.1} parent=0 // pred_region
    _
  $region29: #{forward.1} parent=0 // pred_fallthru
    _
  %v27 = vld [vmem:[%s0] sm:$0xff]
  %v28 = vpack.c.bf16 %v27, %v27
  %v29 = vld [vmem:[%s1] sm:$0xf]
  %v30 = vld [vmem:[%s1 + $0x4] sm:$0xf]
  %v31 = vld [vmem:[%s2] sm:$0x1]
  %v33 = vlaneseq
  %v34 = vshrl.u32 %v33, 7
  %v35 = vsub.s32 0, %v34
  %v36 = vrot.slane %v31, %v35
  %v40 = vunpack.c.l.b16 %v29
  %v41 = vunpack.c.l.b16 %v30
  %v42 = vpack.c.b16 %v41, %v40
  %vm44 = vcmask 130048
  %v46 = vsel %vm44, %v28, 0
  %48 = vmatprep.subr.bf16.mxu0 0
  %49 = vmatpush1.bf16.msra.mxu0 %v42
  %50 = vmatprep.subr.bf16.mxu0 0
  %51 = vmatpush1.bf16.msra.mxu0 0
  %52 = vmatprep.subr.bf16.mxu0 0
  %53 = vmatpush1.bf16.msra.mxu0 0
  %54 = vmatprep.subr.bf16.mxu0 0
  %55 = vmatpush1.bf16.msra.mxu0 0
  %56 = vmatprep.subr.bf16.mxu0 0
  %57 = vmatpush1.bf16.msra.mxu0 0
  %58 = vmatprep.subr.bf16.mxu0 0
  %59 = vmatpush1.bf16.msra.mxu0 0
  %60 = vmatprep.subr.bf16.mxu0 0
  %61 = vmatpush1.bf16.msra.mxu0 0
  %62 = vmatprep.subr.bf16.mxu0 0
  %63 = vmatpush1.bf16.msra.mxu0 0
  %64 = vmatprep.subr.bf16.mxu0 0
  %65 = vmatpush1.bf16.msra.mxu0 0
  %66 = vmatprep.subr.bf16.mxu0 0
  %67 = vmatpush1.bf16.msra.mxu0 0
  %68 = vmatprep.subr.bf16.mxu0 0
  %69 = vmatpush1.bf16.msra.mxu0 0
  %70 = vmatprep.subr.bf16.mxu0 0
  %71 = vmatpush1.bf16.msra.mxu0 0
  %72 = vmatprep.subr.bf16.mxu0 0
  %73 = vmatpush1.bf16.msra.mxu0 0
  %74 = vmatprep.subr.bf16.mxu0 0
  %75 = vmatpush1.bf16.msra.mxu0 0
  %76 = vmatprep.subr.bf16.mxu0 0
  %77 = vmatpush1.bf16.msra.mxu0 0
  %78 = vmatprep.subr.bf16.mxu0 0
  %79 = vmatpush1.bf16.msra.mxu0 0
  %80 = vmatprep.mubr.bf16.mxu0 0
  %81 = vmatmul.mubr.bf16.gmra.mrb[0].mxu0 %v46
  %v82 = vpop.f32.mrb[0].mxu0
  %v83 = vadd.f32 %v36, %v82
  %v84 = vpop.f32.mrb[0].mxu0
  %v85 = vpop.f32.mrb[0].mxu0
  %v86 = vpop.f32.mrb[0].mxu0
  %87 = vdwg.mxu0
  %v88 = vmax.f32 %v83, 0.0
  %v89 = vpack.c.bf16 %v88, %v88
  %v90 = vld [vmem:[%s3] sm:$0xf]
  %v91 = vld [vmem:[%s3 + $0x4] sm:$0xf]
  %v92 = vld [vmem:[%s3 + $0x8] sm:$0xf]
  %v93 = vld [vmem:[%s3 + $0xc] sm:$0xf]
  %v94 = vld [vmem:[%s3 + $0x10] sm:$0xf]
  %v95 = vld [vmem:[%s3 + $0x14] sm:$0xf]
  %v96 = vld [vmem:[%s3 + $0x18] sm:$0xf]
  %v97 = vld [vmem:[%s3 + $0x1c] sm:$0xf]
  %v98 = vld [vmem:[%s3 + $0x20] sm:$0xf]
  %v99 = vld [vmem:[%s3 + $0x24] sm:$0xf]
  %v100 = vld [vmem:[%s3 + $0x28] sm:$0xf]
  %v101 = vld [vmem:[%s3 + $0x2c] sm:$0xf]
  %v102 = vld [vmem:[%s3 + $0x30] sm:$0xf]
  %v103 = vld [vmem:[%s3 + $0x34] sm:$0xf]
  %v104 = vld [vmem:[%s3 + $0x38] sm:$0xf]
  %v105 = vld [vmem:[%s3 + $0x3c] sm:$0xf]
  %v106 = vld [vmem:[%s4] sm:$0x1]
  %v108 = vlaneseq
  %v109 = vshrl.u32 %v108, 7
  %v110 = vsub.s32 0, %v109
  %v111 = vrot.slane %v106, %v110
  %v129 = vunpack.c.l.b16 %v90
  %v130 = vunpack.c.l.b16 %v91
  %v131 = vunpack.c.l.b16 %v92
  %v132 = vunpack.c.l.b16 %v93
  %v133 = vunpack.c.l.b16 %v94
  %v134 = vunpack.c.l.b16 %v95
  %v135 = vunpack.c.l.b16 %v96
  %v136 = vunpack.c.l.b16 %v97
  %v137 = vunpack.c.l.b16 %v98
  %v138 = vunpack.c.l.b16 %v99
  %v139 = vunpack.c.l.b16 %v100
  %v140 = vunpack.c.l.b16 %v101
  %v141 = vunpack.c.l.b16 %v102
  %v142 = vunpack.c.l.b16 %v103
  %v143 = vunpack.c.l.b16 %v104
  %v144 = vunpack.c.l.b16 %v105
  %v145 = vpack.c.b16 %v130, %v129
  %v146 = vpack.c.b16 %v132, %v131
  %v147 = vpack.c.b16 %v134, %v133
  %v148 = vpack.c.b16 %v136, %v135
  %v149 = vpack.c.b16 %v138, %v137
  %v150 = vpack.c.b16 %v140, %v139
  %v151 = vpack.c.b16 %v142, %v141
  %v152 = vpack.c.b16 %v144, %v143
  %161 = vmatprep.subr.bf16.mxu0 0
  %162 = vmatpush1.bf16.msra.mxu0 %v145
  %163 = vmatprep.subr.bf16.mxu0 0
  %164 = vmatpush1.bf16.msra.mxu0 %v146
  %165 = vmatprep.subr.bf16.mxu0 0
  %166 = vmatpush1.bf16.msra.mxu0 %v147
  %167 = vmatprep.subr.bf16.mxu0 0
  %168 = vmatpush1.bf16.msra.mxu0 %v148
  %169 = vmatprep.subr.bf16.mxu0 0
  %170 = vmatpush1.bf16.msra.mxu0 %v149
  %171 = vmatprep.subr.bf16.mxu0 0
  %172 = vmatpush1.bf16.msra.mxu0 %v150
  %173 = vmatprep.subr.bf16.mxu0 0
  %174 = vmatpush1.bf16.msra.mxu0 %v151
  %175 = vmatprep.subr.bf16.mxu0 0
  %176 = vmatpush1.bf16.msra.mxu0 %v152
  %177 = vmatprep.subr.bf16.mxu0 0
  %178 = vmatpush1.bf16.msra.mxu0 0
  %179 = vmatprep.subr.bf16.mxu0 0
  %180 = vmatpush1.bf16.msra.mxu0 0
  %181 = vmatprep.subr.bf16.mxu0 0
  %182 = vmatpush1.bf16.msra.mxu0 0
  %183 = vmatprep.subr.bf16.mxu0 0
  %184 = vmatpush1.bf16.msra.mxu0 0
  %185 = vmatprep.subr.bf16.mxu0 0
  %186 = vmatpush1.bf16.msra.mxu0 0
  %187 = vmatprep.subr.bf16.mxu0 0
  %188 = vmatpush1.bf16.msra.mxu0 0
  %189 = vmatprep.subr.bf16.mxu0 0
  %190 = vmatpush1.bf16.msra.mxu0 0
  %191 = vmatprep.subr.bf16.mxu0 0
  %192 = vmatpush1.bf16.msra.mxu0 0
  %193 = vmatprep.mubr.bf16.mxu0 0
  %194 = vmatmul.mubr.bf16.gmra.mrb[0].mxu0 %v89
  %v195 = vpop.f32.mrb[0].mxu0
  %v196 = vadd.f32 %v111, %v195
  %v197 = vpop.f32.mrb[0].mxu0
  %v198 = vpop.f32.mrb[0].mxu0
  %v199 = vpop.f32.mrb[0].mxu0
  %200 = vdwg.mxu0
  %v201 = vmax.f32 %v196, 0.0
  %v202 = vpack.c.bf16 %v201, %v201
  %v203 = vld [vmem:[%s5] sm:$0xf]
  %v204 = vld [vmem:[%s5 + $0x4] sm:$0xf]
  %v205 = vld [vmem:[%s5 + $0x8] sm:$0xf]
  %v206 = vld [vmem:[%s5 + $0xc] sm:$0xf]
  %v207 = vld [vmem:[%s5 + $0x10] sm:$0xf]
  %v208 = vld [vmem:[%s5 + $0x14] sm:$0xf]
  %v209 = vld [vmem:[%s5 + $0x18] sm:$0xf]
  %v210 = vld [vmem:[%s5 + $0x1c] sm:$0xf]
  %v211 = vld [vmem:[%s5 + $0x20] sm:$0xf]
  %v212 = vld [vmem:[%s5 + $0x24] sm:$0xf]
  %v213 = vld [vmem:[%s5 + $0x28] sm:$0xf]
  %v214 = vld [vmem:[%s5 + $0x2c] sm:$0xf]
  %v215 = vld [vmem:[%s5 + $0x30] sm:$0xf]
  %v216 = vld [vmem:[%s5 + $0x34] sm:$0xf]
  %v217 = vld [vmem:[%s5 + $0x38] sm:$0xf]
  %v218 = vld [vmem:[%s5 + $0x3c] sm:$0xf]
  %v219 = vld [vmem:[%s6] sm:$0x1]
  %v221 = vlaneseq
  %v222 = vshrl.u32 %v221, 7
  %v223 = vsub.s32 0, %v222
  %v224 = vrot.slane %v219, %v223
  %v242 = vunpack.c.l.b16 %v203
  %v243 = vunpack.c.l.b16 %v204
  %v244 = vunpack.c.l.b16 %v205
  %v245 = vunpack.c.l.b16 %v206
  %v246 = vunpack.c.l.b16 %v207
  %v247 = vunpack.c.l.b16 %v208
  %v248 = vunpack.c.l.b16 %v209
  %v249 = vunpack.c.l.b16 %v210
  %v250 = vunpack.c.l.b16 %v211
  %v251 = vunpack.c.l.b16 %v212
  %v252 = vunpack.c.l.b16 %v213
  %v253 = vunpack.c.l.b16 %v214
  %v254 = vunpack.c.l.b16 %v215
  %v255 = vunpack.c.l.b16 %v216
  %v256 = vunpack.c.l.b16 %v217
  %v257 = vunpack.c.l.b16 %v218
  %v258 = vpack.c.b16 %v243, %v242
  %v259 = vpack.c.b16 %v245, %v244
  %v260 = vpack.c.b16 %v247, %v246
  %v261 = vpack.c.b16 %v249, %v248
  %v262 = vpack.c.b16 %v251, %v250
  %v263 = vpack.c.b16 %v253, %v252
  %v264 = vpack.c.b16 %v255, %v254
  %v265 = vpack.c.b16 %v257, %v256
  %274 = vmatprep.subr.bf16.mxu0 0
  %275 = vmatpush1.bf16.msra.mxu0 %v258
  %276 = vmatprep.subr.bf16.mxu0 0
  %277 = vmatpush1.bf16.msra.mxu0 %v259
  %278 = vmatprep.subr.bf16.mxu0 0
  %279 = vmatpush1.bf16.msra.mxu0 %v260
  %280 = vmatprep.subr.bf16.mxu0 0
  %281 = vmatpush1.bf16.msra.mxu0 %v261
  %282 = vmatprep.subr.bf16.mxu0 0
  %283 = vmatpush1.bf16.msra.mxu0 %v262
  %284 = vmatprep.subr.bf16.mxu0 0
  %285 = vmatpush1.bf16.msra.mxu0 %v263
  %286 = vmatprep.subr.bf16.mxu0 0
  %287 = vmatpush1.bf16.msra.mxu0 %v264
  %288 = vmatprep.subr.bf16.mxu0 0
  %289 = vmatpush1.bf16.msra.mxu0 %v265
  %290 = vmatprep.subr.bf16.mxu0 0
  %291 = vmatpush1.bf16.msra.mxu0 0
  %292 = vmatprep.subr.bf16.mxu0 0
  %293 = vmatpush1.bf16.msra.mxu0 0
  %294 = vmatprep.subr.bf16.mxu0 0
  %295 = vmatpush1.bf16.msra.mxu0 0
  %296 = vmatprep.subr.bf16.mxu0 0
  %297 = vmatpush1.bf16.msra.mxu0 0
  %298 = vmatprep.subr.bf16.mxu0 0
  %299 = vmatpush1.bf16.msra.mxu0 0
  %300 = vmatprep.subr.bf16.mxu0 0
  %301 = vmatpush1.bf16.msra.mxu0 0
  %302 = vmatprep.subr.bf16.mxu0 0
  %303 = vmatpush1.bf16.msra.mxu0 0
  %304 = vmatprep.subr.bf16.mxu0 0
  %305 = vmatpush1.bf16.msra.mxu0 0
  %306 = vmatprep.mubr.bf16.mxu0 0
  %307 = vmatmul.mubr.bf16.gmra.mrb[0].mxu0 %v202
  %v308 = vpop.f32.mrb[0].mxu0
  %v309 = vadd.f32 %v224, %v308
  %v310 = vpop.f32.mrb[0].mxu0
  %v311 = vpop.f32.mrb[0].mxu0
  %v312 = vpop.f32.mrb[0].mxu0
  %313 = vdwg.mxu0
  %vm314 = vcmask 64512
  %315 = vst.msk [vmem:[%s7] sm:$0xff] %vm314, %v309
  // Predicated region
  $region30: #{forward.1} parent=0 // pred_check
    _
  $region31: #{forward.1} parent=0 // pred_check_branch
    %317 = sbr.rel (0) target = $region33
  $region32: #{forward.1} parent=0 // pred_region
    _
  $region33: #{forward.1} parent=0 // pred_fallthru
    _
  // Predicated region
  $region34: #{forward.1} parent=0 // pred_check
    _
  $region35: #{forward.1} parent=0 // pred_check_branch
    %319 = sbr.rel (0) target = $region37
  $region36: #{forward.1} parent=0 // pred_region
    _
  $region37: #{forward.1} parent=0 // pred_fallthru
    _

</llo_original>
